<compile_context>
chip_gen: v5e
topology: v5e:2x2
jax: 0.10.0
libtpu: 0.0.40
codegen_flags: <defaults>
</compile_context>

<pallas_src>
import jax
import jax.numpy as jnp
from jax import lax
from jax.experimental import pallas as pl
from jax.experimental.pallas import tpu as pltpu


def _mlp_predictor_kernel(xi_ref, xj_ref, w1_ref, b1_ref, w2_ref, b2_ref, o_ref):
    # Hadamard product (VPU)
    x = xi_ref[...] * xj_ref[...]                                     # (tm, H)
    # Hidden linear + bias + ReLU (MXU + VPU)
    h = jnp.dot(x, w1_ref[...], preferred_element_type=jnp.float32)   # (tm, H)
    h = jnp.maximum(h + b1_ref[...], 0.0)
    # Output linear: contract H of w2 (1,H) with H of h (tm,H) -> (1, tm).
    # Result is produced lane-major directly (pairs on the lane axis), giving
    # a lane-dense output tile with no transpose/relayout.
    o_row = lax.dot_general(
        w2_ref[...], h,
        dimension_numbers=(((1,), (1,)), ((), ())),
        preferred_element_type=jnp.float32,
    )                                                                  # (1, tm)
    o_ref[0] = (o_row + b2_ref[0, 0]).astype(o_ref.dtype)
    # TODO(synk): dropout skipped (eval-mode identity); add PRNG mask via
    # pltpu.prng_random_bits if a training-mode kernel is ever needed.


def hadamard_mlp_predictor(x_i, x_j, w1, b1, w2, b2, *, tm=512):
    """x_i, x_j: (N, H). w1: (H, H) torch-style (out,in). w2: (1, H). Returns (N,)."""
    N, H = x_i.shape

    # Clamp the row tile to (sublane-aligned) N; pad N up to a multiple of tm.
    tm = int(max(8, min(tm, ((N + 7) // 8) * 8)))
    n_tiles = pl.cdiv(N, tm)
    n_pad = n_tiles * tm
    if n_pad != N:
        pad = n_pad - N
        x_i = jnp.pad(x_i, ((0, pad), (0, 0)))
        x_j = jnp.pad(x_j, ((0, pad), (0, 0)))

    # Pre-transpose torch Linear W1 to (in, out) so the kernel does x @ W1.
    w1_t = jnp.asarray(w1, jnp.float32).T                  # (H, H)
    b1_r = jnp.asarray(b1, jnp.float32).reshape(1, H)      # (1, H)
    w2_r = jnp.asarray(w2, jnp.float32).reshape(1, H)      # (1, H) row (no transpose)
    b2_r = jnp.asarray(b2, jnp.float32).reshape(1, 1)      # (1, 1) scalar -> SMEM

    # Explicit scoped-VMEM budget: 2 inputs x 2 pipeline buffers + resident
    # (double-buffered) weights + output rows + headroom.  Safe on every
    # generation (v7x physical VMEM is 64 MiB).
    tile_bytes = tm * H * 4
    weight_bytes = (H * H + 2 * H) * 4
    need = 4 * tile_bytes + 2 * weight_bytes + 4 * tm * 4 + (4 << 20)
    vmem_limit = int(min(max(need, 16 << 20), 48 << 20))

    out3d = pl.pallas_call(
        _mlp_predictor_kernel,
        out_shape=jax.ShapeDtypeStruct((n_tiles, 1, tm), jnp.float32),
        grid_spec=pltpu.PrefetchScalarGridSpec(
            num_scalar_prefetch=0,
            grid=(n_tiles,),
            in_specs=[
                pl.BlockSpec((tm, H), lambda i: (i, 0)),   # x_i tile
                pl.BlockSpec((tm, H), lambda i: (i, 0)),   # x_j tile
                pl.BlockSpec((H, H), lambda i: (0, 0)),    # W1^T (resident)
                pl.BlockSpec((1, H), lambda i: (0, 0)),    # b1 row
                pl.BlockSpec((1, H), lambda i: (0, 0)),    # w2 row
                pl.BlockSpec(memory_space=pltpu.MemorySpace.SMEM),  # b2 scalar
            ],
            # Lane-dense output: one (1, tm) row of scores per grid step.
            out_specs=pl.BlockSpec((1, 1, tm), lambda i: (i, 0, 0)),
        ),
        compiler_params=pltpu.CompilerParams(
            dimension_semantics=("parallel",),
            vmem_limit_bytes=vmem_limit,
        ),
    )(x_i, x_j, w1_t, b1_r, w2_r, b2_r)

    return out3d.reshape(-1)[:N]  # .squeeze() in the reference -> (N,)


def _torch_linear_init(key, out_features, in_features):
    """Deterministic init matching nn.Linear's default U(-1/sqrt(fan_in), +1/sqrt(fan_in))."""
    kw, kb = jax.random.split(key)
    bound = 1.0 / jnp.sqrt(jnp.float32(in_features))
    w = jax.random.uniform(kw, (out_features, in_features), jnp.float32, -bound, bound)
    b = jax.random.uniform(kb, (out_features,), jnp.float32, -bound, bound)
    return w, b


def _reference(x_i, x_j, w1, b1, w2, b2):
    x = x_i * x_j
    h = jnp.maximum(x @ w1.T + b1, 0.0)
    return (h @ w2.T + b2)[:, 0]


if __name__ == "__main__":
    h_feats = 128      # module-level constant in the reference file
    n_pairs = 1000     # deliberately NOT a multiple of tm -> exercises padding path

    key = jax.random.PRNGKey(0)
    k_xi, k_xj, k_l1, k_l2 = jax.random.split(key, 4)

    x_i = jax.random.normal(k_xi, (n_pairs, h_feats), jnp.float32)
    x_j = jax.random.normal(k_xj, (n_pairs, h_feats), jnp.float32)

    # lins[0]: Linear(h_feats, h_feats); lins[-1]: Linear(h_feats, 1)
    w1, b1 = _torch_linear_init(k_l1, h_feats, h_feats)
    w2, b2 = _torch_linear_init(k_l2, 1, h_feats)

    out = hadamard_mlp_predictor(x_i, x_j, w1, b1, w2, b2, tm=512)
    out = jax.block_until_ready(out)

    ref = _reference(x_i, x_j, w1, b1, w2, b2)
    assert out.shape == (n_pairs,)
    assert jnp.allclose(out, ref, atol=2e-4, rtol=2e-4), float(jnp.max(jnp.abs(out - ref)))

    print("KERNEL_OK")
</pallas_src>

<mosaic_0001>
module attributes {stable_mosaic.version = 11 : i64} {
  func.func @_mlp_predictor_kernel(%arg0: i32, %arg1: memref<512x128xf32, #tpu.memory_space<vmem>>, %arg2: memref<512x128xf32, #tpu.memory_space<vmem>>, %arg3: memref<128x128xf32, #tpu.memory_space<vmem>>, %arg4: memref<1x128xf32, #tpu.memory_space<vmem>>, %arg5: memref<1x128xf32, #tpu.memory_space<vmem>>, %arg6: memref<1x1xf32, #tpu.memory_space<smem>>, %arg7: memref<1x1x512xf32, #tpu.memory_space<vmem>>) attributes {dimension_semantics = [#tpu.dimension_semantics<parallel>], iteration_bounds = array<i64: 2>, scalar_prefetch = 0 : i64, scratch_operands = 0 : i64, tpu.core_type = #tpu.core_type<tc>, window_params = [{transform_indices = @transform_0, window_bounds = array<i64: 512, 128>}, {transform_indices = @transform_1, window_bounds = array<i64: 512, 128>}, {pipeline_mode = #tpu.pipeline_mode<synchronous>, transform_indices = @transform_2, window_bounds = array<i64: 128, 128>}, {pipeline_mode = #tpu.pipeline_mode<synchronous>, transform_indices = @transform_3, window_bounds = array<i64: 1, 128>}, {pipeline_mode = #tpu.pipeline_mode<synchronous>, transform_indices = @transform_4, window_bounds = array<i64: 1, 128>}, {transform_indices = @transform_5, window_bounds = array<i64: 1, 1>}, {transform_indices = @transform_6, window_bounds = array<i64: 1, 1, 512>}]} {
    %c0 = arith.constant 0 : index
    %c0_0 = arith.constant 0 : index
    %0 = vector.load %arg1[%c0, %c0_0] : memref<512x128xf32, #tpu.memory_space<vmem>>, vector<512x128xf32>
    %c0_1 = arith.constant 0 : index
    %c0_2 = arith.constant 0 : index
    %1 = vector.load %arg2[%c0_1, %c0_2] : memref<512x128xf32, #tpu.memory_space<vmem>>, vector<512x128xf32>
    %2 = arith.mulf %0, %1 : vector<512x128xf32>
    %c0_3 = arith.constant 0 : index
    %c0_4 = arith.constant 0 : index
    %3 = vector.load %arg3[%c0_3, %c0_4] : memref<128x128xf32, #tpu.memory_space<vmem>>, vector<128x128xf32>
    %cst = arith.constant dense<0.000000e+00> : vector<512x128xf32>
    %4 = tpu.matmul %2, %3, %cst {dimension_numbers = #tpu.dot_dimension_numbers<[1], [0], [0], [1], [0, 0, 1, 1], [], []>} : vector<512x128xf32>, vector<128x128xf32>, vector<512x128xf32> -> vector<512x128xf32>
    %c0_5 = arith.constant 0 : index
    %c0_6 = arith.constant 0 : index
    %5 = vector.load %arg4[%c0_5, %c0_6] : memref<1x128xf32, #tpu.memory_space<vmem>>, vector<1x128xf32>
    %6 = vector.broadcast %5 : vector<1x128xf32> to vector<512x128xf32>
    %7 = arith.addf %4, %6 : vector<512x128xf32>
    %cst_7 = arith.constant 0.000000e+00 : f32
    %8 = vector.broadcast %cst_7 : f32 to vector<512x128xf32>
    %9 = arith.maximumf %7, %8 : vector<512x128xf32>
    %c0_8 = arith.constant 0 : index
    %c0_9 = arith.constant 0 : index
    %10 = vector.load %arg5[%c0_8, %c0_9] : memref<1x128xf32, #tpu.memory_space<vmem>>, vector<1x128xf32>
    %cst_10 = arith.constant dense<0.000000e+00> : vector<1x512xf32>
    %11 = tpu.matmul %10, %9, %cst_10 {dimension_numbers = #tpu.dot_dimension_numbers<[1], [1], [0], [0], [0, 0, 1, 0], [], []>} : vector<1x128xf32>, vector<512x128xf32>, vector<1x512xf32> -> vector<1x512xf32>
    %c0_11 = arith.constant 0 : index
    %c0_12 = arith.constant 0 : index
    %12 = memref.load %arg6[%c0_11, %c0_12] : memref<1x1xf32, #tpu.memory_space<smem>>
    %13 = vector.broadcast %12 : f32 to vector<1x512xf32>
    %14 = arith.addf %11, %13 : vector<1x512xf32>
    %c0_13 = arith.constant 0 : index
    %c0_14 = arith.constant 0 : index
    %c0_15 = arith.constant 0 : index
    %15 = vector.load %arg7[%c0_13, %c0_14, %c0_15] : memref<1x1x512xf32, #tpu.memory_space<vmem>>, vector<1x1x512xf32>
    %16 = vector.shape_cast %15 : vector<1x1x512xf32> to vector<1x512xf32>
    %17 = vector.shape_cast %14 : vector<1x512xf32> to vector<1x1x512xf32>
    tpu.vector_store %arg7[%c0_13, %c0_14, %c0_15], %17 {strides = array<i32>} : memref<1x1x512xf32, #tpu.memory_space<vmem>>, vector<1x1x512xf32>,
    return
  }
  func.func @transform_0(%arg0: i32) -> (i32, i32) {
    %c0_i32 = arith.constant 0 : i32
    %c0_i32_0 = arith.constant 0 : i32
    return %arg0, %c0_i32 : i32, i32
  }
  func.func @transform_1(%arg0: i32) -> (i32, i32) {
    %c0_i32 = arith.constant 0 : i32
    %c0_i32_0 = arith.constant 0 : i32
    return %arg0, %c0_i32 : i32, i32
  }
  func.func @transform_2(%arg0: i32) -> (i32, i32) {
    %c0_i32 = arith.constant 0 : i32
    %c0_i32_0 = arith.constant 0 : i32
    %c0_i32_1 = arith.constant 0 : i32
    return %c0_i32, %c0_i32_0 : i32, i32
  }
  func.func @transform_3(%arg0: i32) -> (i32, i32) {
    %c0_i32 = arith.constant 0 : i32
    %c0_i32_0 = arith.constant 0 : i32
    %c0_i32_1 = arith.constant 0 : i32
    return %c0_i32, %c0_i32_0 : i32, i32
  }
  func.func @transform_4(%arg0: i32) -> (i32, i32) {
    %c0_i32 = arith.constant 0 : i32
    %c0_i32_0 = arith.constant 0 : i32
    %c0_i32_1 = arith.constant 0 : i32
    return %c0_i32, %c0_i32_0 : i32, i32
  }
  func.func @transform_5(%arg0: i32) -> (i32, i32) {
    %c0_i32 = arith.constant 0 : i32
    %c0_i32_0 = arith.constant 0 : i32
    %c0_i32_1 = arith.constant 0 : i32
    return %c0_i32, %c0_i32_0 : i32, i32
  }
  func.func @transform_6(%arg0: i32) -> (i32, i32, i32) {
    %c0_i32 = arith.constant 0 : i32
    %c0_i32_0 = arith.constant 0 : i32
    %c0_i32_1 = arith.constant 0 : i32
    return %arg0, %c0_i32, %c0_i32_0 : i32, i32, i32
  }
}

</mosaic_0001>

<llo_original>
// kernel: tpu_custom_call.1
$region0: #{tpu_custom_call.1}
  #allocation0 [shape = 'u32[]', space=smem, size = 0x4, offset = 0x4, fixed_abs, tag = 'smem constant byte address 0x4 - core index']
  #allocation1 [shape = 'u32[72,128]{1,0:T(1,128)}', space=vmem, size = 0x9000, scoped, tag = 'internal scratch']
  #allocation2 [shape = 'f32[1,1]{1,0:T(1,128)S(6)}', space=smem, size = 0x200, scoped, tag = 'scoped memory for tpu_custom_call.1']
  %s0 = inlined_call_operand.hbm [shape: f32[1024,128], index: 0, kind: input, shape index: {}]
  %s1 = inlined_call_operand.hbm [shape: f32[1024,128], index: 1, kind: input, shape index: {}]
  %s2 = inlined_call_operand.hbm [shape: f32[128,128], index: 2, kind: input, shape index: {}]
  %s3 = inlined_call_operand.vmem [shape: f32[1,128], index: 3, kind: input, shape index: {}]
  %s4 = inlined_call_operand.vmem [shape: f32[1,128], index: 4, kind: input, shape index: {}]
  %s5 = inlined_call_operand.<no memory space> [shape: f32[1,1], index: 5, kind: input, shape index: {}]
  %s6 = inlined_call_operand.hbm [shape: f32[2,1,512], index: 6, kind: output, shape index: {}]
  %s7 = sld [smem:[#allocation0]]
  $region69: #{tpu_custom_call.1} parent=0
    _
  %s9 = ssub.s32 1, %s7
  %s10 = scalar_select 0, %s9, %s7
  %11 = sst [smem:[#allocation2]] %s5
  $region1: #{tpu_custom_call.1} parent=0
    #allocation3 [shape = 'u8[524288]{0}', space=vmem, size = 0x80000, scoped, tag = 'input window, operand 0']
    #allocation4 [shape = 's32[2]{0}', space=sflag, size = 0x8, scoped, tag = 'scoped memory for tpu_custom_call.1']
    #allocation5 [shape = 's32[2]{0}', space=sflag, size = 0x8, scoped, tag = 'scoped memory for tpu_custom_call.1']
    #allocation6 [shape = 'u8[524288]{0}', space=vmem, size = 0x80000, scoped, tag = 'input window, operand 1']
    #allocation7 [shape = 's32[2]{0}', space=sflag, size = 0x8, scoped, tag = 'scoped memory for tpu_custom_call.1']
    #allocation8 [shape = 'u8[65536]{0}', space=vmem, size = 0x10000, scoped, tag = 'input window, operand 2, single buffered']
    #allocation9 [shape = 'u8[4096]{0}', space=vmem, size = 0x1000, scoped, tag = 'output window, operand 0']
    %12 = vsyncpa [#allocation4], 0
    %s13 = scalar_lea.sflag [#allocation4], 1
    %14 = vsyncpa %s13, 0
    %15 = vsyncpa [#allocation7], 0
    %s16 = scalar_lea.sflag [#allocation7], 1
    %17 = vsyncpa %s16, 0
    %18 = vsyncpa [#allocation5], 0
    %s19 = scalar_lea.sflag [#allocation5], 1
    %20 = vsyncpa %s19, 0
    loop: start=0, step=1, limit=4
    $region2: #{tpu_custom_call.1} parent=1 // loop_pre_header
      _
    $region3: #{tpu_custom_call.1} parent=1 // loop_header
      %s22 = sphi 0, %s26
      %p23 = scmp.ge.s32.totalorder %s22, 4
      %s32 = sphi 0, %s34
      %s35 = sphi 0, %s32
      %s36 = sphi 0, %s35
      %s52 = sphi 0, %s36
      %s58 = sphi 0, %s60
      %s61 = sphi 0, %s58
      %s62 = sphi 0, %s61
      %s78 = sphi 0, %s62
      %s82 = sphi 0, %s82
      %s84 = sphi 0, %s82
      %s85 = sphi 0, %s84
      %s99 = sphi 0, %s85
      %s103 = sphi 0, %s103
      %s105 = sphi 0, %s103
      %s106 = sphi 0, %s105
      %s120 = sphi 0, %s106
      %s124 = sphi 0, %s124
      %s126 = sphi 0, %s124
      %s127 = sphi 0, %s126
      %s141 = sphi 0, %s127
      %s145 = sphi 0, %s145
      %s147 = sphi 0, %s145
      %s148 = sphi 0, %s147
      %s162 = sphi 0, %s148
      %s168 = sphi 0, %s170
      %s171 = sphi 0, %s168
      %s172 = sphi 0, %s171
      %s188 = sphi 0, %s172
    $region4: #{tpu_custom_call.1} parent=1 // loop_header_branch
      %25 = sbr.rel (%p23) target = $region8
    $region5: #{tpu_custom_call.1} parent=1 // loop_body
      %s27 = ssub.s32 %s22, 1
      %s28 = ssub.s32 %s22, 2
      %s29 = sadd.s32 %s22, 1
      %s30 = ssub.s32 %s22, %s29
      %p31 = scmp.eq.s32.totalorder %s30, 0
      %s33 = sadd.s32 %s32, 1
      %s34 = scalar_select %p31, %s32, %s33
      %p37 = pneg %p31
      %p38 = scmp.eq.s32.totalorder %s22, 1
      %p39 = por %p37, %p38
      %p40 = scmp.ne.s32.totalorder %s32, %s35
      %p41 = scmp.eq.s32.totalorder %s22, 0
      %p42 = por %p40, %p41
      %p43 = scmp.ne.s32.totalorder %s32, %s35
      %p44 = scmp.eq.s32.totalorder %s27, 1
      %p45 = por %p43, %p44
      %p46 = scmp.ne.s32.totalorder %s35, %s36
      %p47 = scmp.eq.s32.totalorder %s27, 0
      %p48 = por %p46, %p47
      %p49 = scmp.ne.s32.totalorder %s35, %s36
      %p50 = scmp.eq.s32.totalorder %s28, 1
      %p51 = por %p49, %p50
      %p53 = scmp.ne.s32.totalorder %s36, %s52
      %p54 = scmp.eq.s32.totalorder %s28, 0
      %p55 = por %p53, %p54
      %s56 = ssub.s32 %s22, %s29
      %p57 = scmp.eq.s32.totalorder %s56, 0
      %s59 = sadd.s32 %s58, 1
      %s60 = scalar_select %p57, %s58, %s59
      %p63 = pneg %p57
      %p64 = scmp.eq.s32.totalorder %s22, 1
      %p65 = por %p63, %p64
      %p66 = scmp.ne.s32.totalorder %s58, %s61
      %p67 = scmp.eq.s32.totalorder %s22, 0
      %p68 = por %p66, %p67
      %p69 = scmp.ne.s32.totalorder %s58, %s61
      %p70 = scmp.eq.s32.totalorder %s27, 1
      %p71 = por %p69, %p70
      %p72 = scmp.ne.s32.totalorder %s61, %s62
      %p73 = scmp.eq.s32.totalorder %s27, 0
      %p74 = por %p72, %p73
      %p75 = scmp.ne.s32.totalorder %s61, %s62
      %p76 = scmp.eq.s32.totalorder %s28, 1
      %p77 = por %p75, %p76
      %p79 = scmp.ne.s32.totalorder %s62, %s78
      %p80 = scmp.eq.s32.totalorder %s28, 0
      %p81 = por %p79, %p80
      %s83 = sadd.s32 %s82, 1
      %p86 = scmp.eq.s32.totalorder %s22, 1
      %p87 = scmp.ne.s32.totalorder %s82, %s84
      %p88 = scmp.eq.s32.totalorder %s22, 0
      %p89 = por %p87, %p88
      %p90 = scmp.ne.s32.totalorder %s82, %s84
      %p91 = scmp.eq.s32.totalorder %s27, 1
      %p92 = por %p90, %p91
      %p93 = scmp.ne.s32.totalorder %s84, %s85
      %p94 = scmp.eq.s32.totalorder %s27, 0
      %p95 = por %p93, %p94
      %p96 = scmp.ne.s32.totalorder %s84, %s85
      %p97 = scmp.eq.s32.totalorder %s28, 1
      %p98 = por %p96, %p97
      %p100 = scmp.ne.s32.totalorder %s85, %s99
      %p101 = scmp.eq.s32.totalorder %s28, 0
      %p102 = por %p100, %p101
      %s104 = sadd.s32 %s103, 1
      %p107 = scmp.eq.s32.totalorder %s22, 1
      %p108 = scmp.ne.s32.totalorder %s103, %s105
      %p109 = scmp.eq.s32.totalorder %s22, 0
      %p110 = por %p108, %p109
      %p111 = scmp.ne.s32.totalorder %s103, %s105
      %p112 = scmp.eq.s32.totalorder %s27, 1
      %p113 = por %p111, %p112
      %p114 = scmp.ne.s32.totalorder %s105, %s106
      %p115 = scmp.eq.s32.totalorder %s27, 0
      %p116 = por %p114, %p115
      %p117 = scmp.ne.s32.totalorder %s105, %s106
      %p118 = scmp.eq.s32.totalorder %s28, 1
      %p119 = por %p117, %p118
      %p121 = scmp.ne.s32.totalorder %s106, %s120
      %p122 = scmp.eq.s32.totalorder %s28, 0
      %p123 = por %p121, %p122
      %s125 = sadd.s32 %s124, 1
      %p128 = scmp.eq.s32.totalorder %s22, 1
      %p129 = scmp.ne.s32.totalorder %s124, %s126
      %p130 = scmp.eq.s32.totalorder %s22, 0
      %p131 = por %p129, %p130
      %p132 = scmp.ne.s32.totalorder %s124, %s126
      %p133 = scmp.eq.s32.totalorder %s27, 1
      %p134 = por %p132, %p133
      %p135 = scmp.ne.s32.totalorder %s126, %s127
      %p136 = scmp.eq.s32.totalorder %s27, 0
      %p137 = por %p135, %p136
      %p138 = scmp.ne.s32.totalorder %s126, %s127
      %p139 = scmp.eq.s32.totalorder %s28, 1
      %p140 = por %p138, %p139
      %p142 = scmp.ne.s32.totalorder %s127, %s141
      %p143 = scmp.eq.s32.totalorder %s28, 0
      %p144 = por %p142, %p143
      %s146 = sadd.s32 %s145, 1
      %p149 = scmp.eq.s32.totalorder %s22, 1
      %p150 = scmp.ne.s32.totalorder %s145, %s147
      %p151 = scmp.eq.s32.totalorder %s22, 0
      %p152 = por %p150, %p151
      %p153 = scmp.ne.s32.totalorder %s145, %s147
      %p154 = scmp.eq.s32.totalorder %s27, 1
      %p155 = por %p153, %p154
      %p156 = scmp.ne.s32.totalorder %s147, %s148
      %p157 = scmp.eq.s32.totalorder %s27, 0
      %p158 = por %p156, %p157
      %p159 = scmp.ne.s32.totalorder %s147, %s148
      %p160 = scmp.eq.s32.totalorder %s28, 1
      %p161 = por %p159, %p160
      %p163 = scmp.ne.s32.totalorder %s148, %s162
      %p164 = scmp.eq.s32.totalorder %s28, 0
      %p165 = por %p163, %p164
      %s166 = ssub.s32 %s22, %s29
      %p167 = scmp.eq.s32.totalorder %s166, 0
      %s169 = sadd.s32 %s168, 1
      %s170 = scalar_select %p167, %s168, %s169
      %p173 = pneg %p167
      %p174 = scmp.eq.s32.totalorder %s22, 1
      %p175 = por %p173, %p174
      %p176 = scmp.ne.s32.totalorder %s168, %s171
      %p177 = scmp.eq.s32.totalorder %s22, 0
      %p178 = por %p176, %p177
      %p179 = scmp.ne.s32.totalorder %s168, %s171
      %p180 = scmp.eq.s32.totalorder %s27, 1
      %p181 = por %p179, %p180
      %p182 = scmp.ne.s32.totalorder %s171, %s172
      %p183 = scmp.eq.s32.totalorder %s27, 0
      %p184 = por %p182, %p183
      %p185 = scmp.ne.s32.totalorder %s171, %s172
      %p186 = scmp.eq.s32.totalorder %s28, 1
      %p187 = por %p185, %p186
      %p189 = scmp.ne.s32.totalorder %s172, %s188
      %p190 = scmp.eq.s32.totalorder %s28, 0
      %p191 = por %p189, %p190
      %p192 = scmp.le.s32.totalorder 1, %s22
      %p193 = scmp.lt.s32.totalorder %s22, 3
      %p194 = pnand %p192, %p193
      %p195 = pneg %p194
      // Predicated region
      $region9: #{tpu_custom_call.1} parent=5 // pred_check
        _
      $region10: #{tpu_custom_call.1} parent=5 // pred_check_branch
        %197 = sbr.rel (%p194) target = $region12
      $region11: #{tpu_custom_call.1} parent=5 // pred_region
        %s198 = ssub.s32 %s22, 1
        // Predicated region
        $region13: #{tpu_custom_call.1} parent=11 // pred_check
          %p199 = pneg %p95
        $region14: #{tpu_custom_call.1} parent=11 // pred_check_branch
          %201 = sbr.rel (%p199) target = $region16
        $region15: #{tpu_custom_call.1} parent=11 // pred_region
          %203 = vsyncadd [#allocation7], 0
          %s204 = sshll.u32 %s2, 4
          %s205 = int_to_ptr.hbm [resolvable:$true] %s204
          %s206 = sshll.u32 [#allocation8], 4
          %s207 = int_to_ptr.vmem [resolvable:$true] %s206
          %212 = dma.hbm_to_vmem [thread:$0]  %s205, 2048, %s207, [#allocation7], 128, 128, 8
        $region16: #{tpu_custom_call.1} parent=11 // pred_fallthru
          _
        // Predicated region
        $region17: #{tpu_custom_call.1} parent=11 // pred_check
          %p213 = pneg %p116
        $region18: #{tpu_custom_call.1} parent=11 // pred_check_branch
          %215 = sbr.rel (%p213) target = $region20
        $region19: #{tpu_custom_call.1} parent=11 // pred_region
          _
        $region20: #{tpu_custom_call.1} parent=11 // pred_fallthru
          _
        // Predicated region
        $region21: #{tpu_custom_call.1} parent=11 // pred_check
          %p216 = pneg %p137
        $region22: #{tpu_custom_call.1} parent=11 // pred_check_branch
          %218 = sbr.rel (%p216) target = $region24
        $region23: #{tpu_custom_call.1} parent=11 // pred_region
          _
        $region24: #{tpu_custom_call.1} parent=11 // pred_fallthru
          _
        // Predicated region
        $region25: #{tpu_custom_call.1} parent=11 // pred_check
          %p219 = pneg %p158
        $region26: #{tpu_custom_call.1} parent=11 // pred_check_branch
          %221 = sbr.rel (%p219) target = $region28
        $region27: #{tpu_custom_call.1} parent=11 // pred_region
          _
        $region28: #{tpu_custom_call.1} parent=11 // pred_fallthru
          _
      $region12: #{tpu_custom_call.1} parent=5 // pred_fallthru
        _
      %p222 = scmp.lt.s32.totalorder %s22, 2
      // Predicated region
      $region29: #{tpu_custom_call.1} parent=5 // pred_check
        %p223 = pneg %p222
      $region30: #{tpu_custom_call.1} parent=5 // pred_check_branch
        %225 = sbr.rel (%p223) target = $region32
      $region31: #{tpu_custom_call.1} parent=5 // pred_region
        // Predicated region
        $region33: #{tpu_custom_call.1} parent=31 // pred_check
          %p226 = pneg %p42
        $region34: #{tpu_custom_call.1} parent=31 // pred_check_branch
          %228 = sbr.rel (%p226) target = $region36
        $region35: #{tpu_custom_call.1} parent=31 // pred_region
          %s229 = sand.u32 %s32, 1
          %s230 = scalar_lea.sflag [#allocation4], %s229
          %s231 = sand.u32 %s32, 1
          %s232 = smul.addr %s231, 512
          %s233 = scalar_lea.vmem [#allocation3], %s232
          %s234 = smul.u32 64, %s22
          %236 = vsyncadd %s230, 0
          %s237 = smul.addr %s234, 8
          %s238 = scalar_lea.hbm %s0, %s237
          %s239 = sshll.u32 %s238, 4
          %s240 = int_to_ptr.hbm [resolvable:$true] %s239
          %s241 = sshll.u32 %s233, 4
          %s242 = int_to_ptr.vmem [resolvable:$true] %s241
          %247 = dma.hbm_to_vmem [thread:$0]  %s240, 8192, %s242, %s230, 128, 128, 8
        $region36: #{tpu_custom_call.1} parent=31 // pred_fallthru
          _
        // Predicated region
        $region37: #{tpu_custom_call.1} parent=31 // pred_check
          %p248 = pneg %p68
        $region38: #{tpu_custom_call.1} parent=31 // pred_check_branch
          %250 = sbr.rel (%p248) target = $region40
        $region39: #{tpu_custom_call.1} parent=31 // pred_region
          %s251 = sand.u32 %s22, 1
          %s252 = scalar_lea.sflag [#allocation7], %s251
          %s253 = sand.u32 %s58, 1
          %s254 = smul.addr %s253, 512
          %s255 = scalar_lea.vmem [#allocation6], %s254
          %s256 = smul.u32 64, %s22
          %258 = vsyncadd %s252, 0
          %s259 = smul.addr %s256, 8
          %s260 = scalar_lea.hbm %s1, %s259
          %s261 = sshll.u32 %s260, 4
          %s262 = int_to_ptr.hbm [resolvable:$true] %s261
          %s263 = sshll.u32 %s255, 4
          %s264 = int_to_ptr.vmem [resolvable:$true] %s263
          %269 = dma.hbm_to_vmem [thread:$0]  %s262, 8192, %s264, %s252, 128, 128, 8
        $region40: #{tpu_custom_call.1} parent=31 // pred_fallthru
          _
      $region32: #{tpu_custom_call.1} parent=5 // pred_fallthru
        _
      %p270 = scmp.le.s32.totalorder 1, %s22
      %p271 = scmp.lt.s32.totalorder %s22, 3
      %p272 = pnand %p270, %p271
      %p273 = pneg %p272
      // Predicated region
      $region41: #{tpu_custom_call.1} parent=5 // pred_check
        _
      $region42: #{tpu_custom_call.1} parent=5 // pred_check_branch
        %275 = sbr.rel (%p272) target = $region44
      $region43: #{tpu_custom_call.1} parent=5 // pred_region
        %s276 = ssub.s32 %s22, 1
        %s277 = sand.u32 %s35, 1
        %s278 = scalar_lea.sflag [#allocation4], %s277
        %s279 = sand.u32 %s35, 1
        %s280 = smul.addr %s279, 512
        %s281 = scalar_lea.vmem [#allocation3], %s280
        // Predicated region
        $region45: #{tpu_custom_call.1} parent=43 // pred_check
          %p282 = pneg %p48
        $region46: #{tpu_custom_call.1} parent=43 // pred_check_branch
          %284 = sbr.rel (%p282) target = $region48
        $region47: #{tpu_custom_call.1} parent=43 // pred_region
          %286 = dma.done %s278, 8192
        $region48: #{tpu_custom_call.1} parent=43 // pred_fallthru
          _
        %s287 = sand.u32 %s27, 1
        %s288 = scalar_lea.sflag [#allocation7], %s287
        %s289 = sand.u32 %s61, 1
        %s290 = smul.addr %s289, 512
        %s291 = scalar_lea.vmem [#allocation6], %s290
        // Predicated region
        $region49: #{tpu_custom_call.1} parent=43 // pred_check
          %p292 = pneg %p74
        $region50: #{tpu_custom_call.1} parent=43 // pred_check_branch
          %294 = sbr.rel (%p292) target = $region52
        $region51: #{tpu_custom_call.1} parent=43 // pred_region
          %296 = dma.done %s288, 8192
        $region52: #{tpu_custom_call.1} parent=43 // pred_fallthru
          _
        // Predicated region
        $region53: #{tpu_custom_call.1} parent=43 // pred_check
          %p297 = pneg %p95
        $region54: #{tpu_custom_call.1} parent=43 // pred_check_branch
          %299 = sbr.rel (%p297) target = $region56
        $region55: #{tpu_custom_call.1} parent=43 // pred_region
          %301 = dma.done [#allocation7], 2048
        $region56: #{tpu_custom_call.1} parent=43 // pred_fallthru
          _
        %s302 = sand.u32 %s35, 1
        %s303 = scalar_lea.sflag [#allocation4], %s302
        %s304 = sand.u32 %s35, 1
        %s305 = smul.addr %s304, 512
        %s306 = scalar_lea.vmem [#allocation3], %s305
        %p307 = pneg %p48
        %p308 = pneg %p45
        %s309 = sand.u32 %s27, 1
        %s310 = scalar_lea.sflag [#allocation7], %s309
        %s311 = sand.u32 %s61, 1
        %s312 = smul.addr %s311, 512
        %s313 = scalar_lea.vmem [#allocation6], %s312
        %p314 = pneg %p74
        %p315 = pneg %p71
        %p316 = pneg %p95
        %p317 = pneg %p92
        %p318 = pneg %p116
        %p319 = pneg %p113
        %p320 = pneg %p137
        %p321 = pneg %p134
        %p322 = pneg %p158
        %p323 = pneg %p155
        %p324 = pneg %p184
        %p325 = pneg %p181
        %s326 = sand.u32 %s171, 1
        %s327 = scalar_lea.sflag [#allocation5], %s326
        %s328 = sand.u32 %s171, 1
        %s329 = smul.addr %s328, 4
        %s330 = scalar_lea.vmem [#allocation9], %s329
        %s331 = smul.u32 64, %s27
        %s332 = smul.u32 64, %s27
        %v333 = vld [vmem:[%s281] sm:$0xff]
        %v334 = vld [vmem:[%s281 + $0x8] sm:$0xff]
        %v335 = vld [vmem:[%s281 + $0x10] sm:$0xff]
        %v336 = vld [vmem:[%s281 + $0x18] sm:$0xff]
        %v337 = vld [vmem:[%s281 + $0x20] sm:$0xff]
        %v338 = vld [vmem:[%s281 + $0x28] sm:$0xff]
        %v339 = vld [vmem:[%s281 + $0x30] sm:$0xff]
        %v340 = vld [vmem:[%s281 + $0x38] sm:$0xff]
        %v341 = vld [vmem:[%s281 + $0x40] sm:$0xff]
        %v342 = vld [vmem:[%s281 + $0x48] sm:$0xff]
        %v343 = vld [vmem:[%s281 + $0x50] sm:$0xff]
        %v344 = vld [vmem:[%s281 + $0x58] sm:$0xff]
        %v345 = vld [vmem:[%s281 + $0x60] sm:$0xff]
        %v346 = vld [vmem:[%s281 + $0x68] sm:$0xff]
        %v347 = vld [vmem:[%s281 + $0x70] sm:$0xff]
        %v348 = vld [vmem:[%s281 + $0x78] sm:$0xff]
        %v349 = vld [vmem:[%s281 + $0x80] sm:$0xff]
        %v350 = vld [vmem:[%s281 + $0x88] sm:$0xff]
        %v351 = vld [vmem:[%s281 + $0x90] sm:$0xff]
        %v352 = vld [vmem:[%s281 + $0x98] sm:$0xff]
        %v353 = vld [vmem:[%s281 + $0xa0] sm:$0xff]
        %v354 = vld [vmem:[%s281 + $0xa8] sm:$0xff]
        %v355 = vld [vmem:[%s281 + $0xb0] sm:$0xff]
        %v356 = vld [vmem:[%s281 + $0xb8] sm:$0xff]
        %v357 = vld [vmem:[%s281 + $0xc0] sm:$0xff]
        %v358 = vld [vmem:[%s281 + $0xc8] sm:$0xff]
        %v359 = vld [vmem:[%s281 + $0xd0] sm:$0xff]
        %v360 = vld [vmem:[%s281 + $0xd8] sm:$0xff]
        %v361 = vld [vmem:[%s281 + $0xe0] sm:$0xff]
        %v362 = vld [vmem:[%s281 + $0xe8] sm:$0xff]
        %v363 = vld [vmem:[%s281 + $0xf0] sm:$0xff]
        %v364 = vld [vmem:[%s281 + $0xf8] sm:$0xff]
        %v365 = vld [vmem:[%s281 + $0x100] sm:$0xff]
        %v366 = vld [vmem:[%s281 + $0x108] sm:$0xff]
        %v367 = vld [vmem:[%s281 + $0x110] sm:$0xff]
        %v368 = vld [vmem:[%s281 + $0x118] sm:$0xff]
        %v369 = vld [vmem:[%s281 + $0x120] sm:$0xff]
        %v370 = vld [vmem:[%s281 + $0x128] sm:$0xff]
        %v371 = vld [vmem:[%s281 + $0x130] sm:$0xff]
        %v372 = vld [vmem:[%s281 + $0x138] sm:$0xff]
        %v373 = vld [vmem:[%s281 + $0x140] sm:$0xff]
        %v374 = vld [vmem:[%s281 + $0x148] sm:$0xff]
        %v375 = vld [vmem:[%s281 + $0x150] sm:$0xff]
        %v376 = vld [vmem:[%s281 + $0x158] sm:$0xff]
        %v377 = vld [vmem:[%s281 + $0x160] sm:$0xff]
        %v378 = vld [vmem:[%s281 + $0x168] sm:$0xff]
        %v379 = vld [vmem:[%s281 + $0x170] sm:$0xff]
        %v380 = vld [vmem:[%s281 + $0x178] sm:$0xff]
        %v381 = vld [vmem:[%s281 + $0x180] sm:$0xff]
        %v382 = vld [vmem:[%s281 + $0x188] sm:$0xff]
        %v383 = vld [vmem:[%s281 + $0x190] sm:$0xff]
        %v384 = vld [vmem:[%s281 + $0x198] sm:$0xff]
        %v385 = vld [vmem:[%s281 + $0x1a0] sm:$0xff]
        %v386 = vld [vmem:[%s281 + $0x1a8] sm:$0xff]
        %v387 = vld [vmem:[%s281 + $0x1b0] sm:$0xff]
        %v388 = vld [vmem:[%s281 + $0x1b8] sm:$0xff]
        %v389 = vld [vmem:[%s281 + $0x1c0] sm:$0xff]
        %v390 = vld [vmem:[%s281 + $0x1c8] sm:$0xff]
        %v391 = vld [vmem:[%s281 + $0x1d0] sm:$0xff]
        %v392 = vld [vmem:[%s281 + $0x1d8] sm:$0xff]
        %v393 = vld [vmem:[%s281 + $0x1e0] sm:$0xff]
        %v394 = vld [vmem:[%s281 + $0x1e8] sm:$0xff]
        %v395 = vld [vmem:[%s281 + $0x1f0] sm:$0xff]
        %v396 = vld [vmem:[%s281 + $0x1f8] sm:$0xff]
        %v397 = vld [vmem:[%s291] sm:$0xff]
        %v398 = vld [vmem:[%s291 + $0x8] sm:$0xff]
        %v399 = vld [vmem:[%s291 + $0x10] sm:$0xff]
        %v400 = vld [vmem:[%s291 + $0x18] sm:$0xff]
        %v401 = vld [vmem:[%s291 + $0x20] sm:$0xff]
        %v402 = vld [vmem:[%s291 + $0x28] sm:$0xff]
        %v403 = vld [vmem:[%s291 + $0x30] sm:$0xff]
        %v404 = vld [vmem:[%s291 + $0x38] sm:$0xff]
        %v405 = vld [vmem:[%s291 + $0x40] sm:$0xff]
        %v406 = vld [vmem:[%s291 + $0x48] sm:$0xff]
        %v407 = vld [vmem:[%s291 + $0x50] sm:$0xff]
        %v408 = vld [vmem:[%s291 + $0x58] sm:$0xff]
        %v409 = vld [vmem:[%s291 + $0x60] sm:$0xff]
        %v410 = vld [vmem:[%s291 + $0x68] sm:$0xff]
        %v411 = vld [vmem:[%s291 + $0x70] sm:$0xff]
        %v412 = vld [vmem:[%s291 + $0x78] sm:$0xff]
        %v413 = vld [vmem:[%s291 + $0x80] sm:$0xff]
        %v414 = vld [vmem:[%s291 + $0x88] sm:$0xff]
        %v415 = vld [vmem:[%s291 + $0x90] sm:$0xff]
        %v416 = vld [vmem:[%s291 + $0x98] sm:$0xff]
        %v417 = vld [vmem:[%s291 + $0xa0] sm:$0xff]
        %v418 = vld [vmem:[%s291 + $0xa8] sm:$0xff]
        %v419 = vld [vmem:[%s291 + $0xb0] sm:$0xff]
        %v420 = vld [vmem:[%s291 + $0xb8] sm:$0xff]
        %v421 = vld [vmem:[%s291 + $0xc0] sm:$0xff]
        %v422 = vld [vmem:[%s291 + $0xc8] sm:$0xff]
        %v423 = vld [vmem:[%s291 + $0xd0] sm:$0xff]
        %v424 = vld [vmem:[%s291 + $0xd8] sm:$0xff]
        %v425 = vld [vmem:[%s291 + $0xe0] sm:$0xff]
        %v426 = vld [vmem:[%s291 + $0xe8] sm:$0xff]
        %v427 = vld [vmem:[%s291 + $0xf0] sm:$0xff]
        %v428 = vld [vmem:[%s291 + $0xf8] sm:$0xff]
        %v429 = vld [vmem:[%s291 + $0x100] sm:$0xff]
        %v430 = vld [vmem:[%s291 + $0x108] sm:$0xff]
        %v431 = vld [vmem:[%s291 + $0x110] sm:$0xff]
        %v432 = vld [vmem:[%s291 + $0x118] sm:$0xff]
        %v433 = vld [vmem:[%s291 + $0x120] sm:$0xff]
        %v434 = vld [vmem:[%s291 + $0x128] sm:$0xff]
        %v435 = vld [vmem:[%s291 + $0x130] sm:$0xff]
        %v436 = vld [vmem:[%s291 + $0x138] sm:$0xff]
        %v437 = vld [vmem:[%s291 + $0x140] sm:$0xff]
        %v438 = vld [vmem:[%s291 + $0x148] sm:$0xff]
        %v439 = vld [vmem:[%s291 + $0x150] sm:$0xff]
        %v440 = vld [vmem:[%s291 + $0x158] sm:$0xff]
        %v441 = vld [vmem:[%s291 + $0x160] sm:$0xff]
        %v442 = vld [vmem:[%s291 + $0x168] sm:$0xff]
        %v443 = vld [vmem:[%s291 + $0x170] sm:$0xff]
        %v444 = vld [vmem:[%s291 + $0x178] sm:$0xff]
        %v445 = vld [vmem:[%s291 + $0x180] sm:$0xff]
        %v446 = vld [vmem:[%s291 + $0x188] sm:$0xff]
        %v447 = vld [vmem:[%s291 + $0x190] sm:$0xff]
        %v448 = vld [vmem:[%s291 + $0x198] sm:$0xff]
        %v449 = vld [vmem:[%s291 + $0x1a0] sm:$0xff]
        %v450 = vld [vmem:[%s291 + $0x1a8] sm:$0xff]
        %v451 = vld [vmem:[%s291 + $0x1b0] sm:$0xff]
        %v452 = vld [vmem:[%s291 + $0x1b8] sm:$0xff]
        %v453 = vld [vmem:[%s291 + $0x1c0] sm:$0xff]
        %v454 = vld [vmem:[%s291 + $0x1c8] sm:$0xff]
        %v455 = vld [vmem:[%s291 + $0x1d0] sm:$0xff]
        %v456 = vld [vmem:[%s291 + $0x1d8] sm:$0xff]
        %v457 = vld [vmem:[%s291 + $0x1e0] sm:$0xff]
        %v458 = vld [vmem:[%s291 + $0x1e8] sm:$0xff]
        %v459 = vld [vmem:[%s291 + $0x1f0] sm:$0xff]
        %v460 = vld [vmem:[%s291 + $0x1f8] sm:$0xff]
        %v461 = vmul.f32 %v333, %v397
        %v462 = vmul.f32 %v334, %v398
        %v463 = vmul.f32 %v335, %v399
        %v464 = vmul.f32 %v336, %v400
        %v465 = vmul.f32 %v337, %v401
        %v466 = vmul.f32 %v338, %v402
        %v467 = vmul.f32 %v339, %v403
        %v468 = vmul.f32 %v340, %v404
        %v469 = vmul.f32 %v341, %v405
        %v470 = vmul.f32 %v342, %v406
        %v471 = vmul.f32 %v343, %v407
        %v472 = vmul.f32 %v344, %v408
        %v473 = vmul.f32 %v345, %v409
        %v474 = vmul.f32 %v346, %v410
        %v475 = vmul.f32 %v347, %v411
        %v476 = vmul.f32 %v348, %v412
        %v477 = vmul.f32 %v349, %v413
        %v478 = vmul.f32 %v350, %v414
        %v479 = vmul.f32 %v351, %v415
        %v480 = vmul.f32 %v352, %v416
        %v481 = vmul.f32 %v353, %v417
        %v482 = vmul.f32 %v354, %v418
        %v483 = vmul.f32 %v355, %v419
        %v484 = vmul.f32 %v356, %v420
        %v485 = vmul.f32 %v357, %v421
        %v486 = vmul.f32 %v358, %v422
        %v487 = vmul.f32 %v359, %v423
        %v488 = vmul.f32 %v360, %v424
        %v489 = vmul.f32 %v361, %v425
        %v490 = vmul.f32 %v362, %v426
        %v491 = vmul.f32 %v363, %v427
        %v492 = vmul.f32 %v364, %v428
        %v493 = vmul.f32 %v365, %v429
        %v494 = vmul.f32 %v366, %v430
        %v495 = vmul.f32 %v367, %v431
        %v496 = vmul.f32 %v368, %v432
        %v497 = vmul.f32 %v369, %v433
        %v498 = vmul.f32 %v370, %v434
        %v499 = vmul.f32 %v371, %v435
        %v500 = vmul.f32 %v372, %v436
        %v501 = vmul.f32 %v373, %v437
        %v502 = vmul.f32 %v374, %v438
        %v503 = vmul.f32 %v375, %v439
        %v504 = vmul.f32 %v376, %v440
        %v505 = vmul.f32 %v377, %v441
        %v506 = vmul.f32 %v378, %v442
        %v507 = vmul.f32 %v379, %v443
        %v508 = vmul.f32 %v380, %v444
        %v509 = vmul.f32 %v381, %v445
        %v510 = vmul.f32 %v382, %v446
        %v511 = vmul.f32 %v383, %v447
        %v512 = vmul.f32 %v384, %v448
        %v513 = vmul.f32 %v385, %v449
        %v514 = vmul.f32 %v386, %v450
        %v515 = vmul.f32 %v387, %v451
        %v516 = vmul.f32 %v388, %v452
        %v517 = vmul.f32 %v389, %v453
        %v518 = vmul.f32 %v390, %v454
        %v519 = vmul.f32 %v391, %v455
        %v520 = vmul.f32 %v392, %v456
        %v521 = vmul.f32 %v393, %v457
        %v522 = vmul.f32 %v394, %v458
        %v523 = vmul.f32 %v395, %v459
        %v524 = vmul.f32 %v396, %v460
        %v525 = vld [vmem:[#allocation8] sm:$0xff]
        %v526 = vld [vmem:[#allocation8 + $0x8] sm:$0xff]
        %v527 = vld [vmem:[#allocation8 + $0x10] sm:$0xff]
        %v528 = vld [vmem:[#allocation8 + $0x18] sm:$0xff]
        %v529 = vld [vmem:[#allocation8 + $0x20] sm:$0xff]
        %v530 = vld [vmem:[#allocation8 + $0x28] sm:$0xff]
        %v531 = vld [vmem:[#allocation8 + $0x30] sm:$0xff]
        %v532 = vld [vmem:[#allocation8 + $0x38] sm:$0xff]
        %v533 = vld [vmem:[#allocation8 + $0x40] sm:$0xff]
        %v534 = vld [vmem:[#allocation8 + $0x48] sm:$0xff]
        %v535 = vld [vmem:[#allocation8 + $0x50] sm:$0xff]
        %v536 = vld [vmem:[#allocation8 + $0x58] sm:$0xff]
        %v537 = vld [vmem:[#allocation8 + $0x60] sm:$0xff]
        %v538 = vld [vmem:[#allocation8 + $0x68] sm:$0xff]
        %v539 = vld [vmem:[#allocation8 + $0x70] sm:$0xff]
        %v540 = vld [vmem:[#allocation8 + $0x78] sm:$0xff]
        %v541 = vld [vmem:[%s3] sm:$0x1]
        %v543 = vperm.slane %v541, 0
        %545 = vmatpush.msra.mxu0 %v540
        %546 = vmatpush.msra.mxu0 %v539
        %547 = vmatpush.msra.mxu0 %v538
        %548 = vmatpush.msra.mxu0 %v537
        %549 = vmatpush.msra.mxu0 %v536
        %550 = vmatpush.msra.mxu0 %v535
        %551 = vmatpush.msra.mxu0 %v534
        %552 = vmatpush.msra.mxu0 %v533
        %553 = vmatpush.msra.mxu0 %v532
        %554 = vmatpush.msra.mxu0 %v531
        %555 = vmatpush.msra.mxu0 %v530
        %556 = vmatpush.msra.mxu0 %v529
        %557 = vmatpush.msra.mxu0 %v528
        %558 = vmatpush.msra.mxu0 %v527
        %559 = vmatpush.msra.mxu0 %v526
        %560 = vmatpush.msra.mxu0 %v525
        %561 = vmatmul.f32.gmra.mxu0 %v461
        %v562 = vpop.f32.mrf.mxu0
        %v563 = vadd.f32 %v543, %v562
        %564 = vmatmul.f32.gmra.mxu0 %v462
        %v565 = vpop.f32.mrf.mxu0
        %v566 = vadd.f32 %v543, %v565
        %567 = vmatmul.f32.gmra.mxu0 %v463
        %v568 = vpop.f32.mrf.mxu0
        %v569 = vadd.f32 %v543, %v568
        %570 = vmatmul.f32.gmra.mxu0 %v464
        %v571 = vpop.f32.mrf.mxu0
        %v572 = vadd.f32 %v543, %v571
        %573 = vmatmul.f32.gmra.mxu0 %v465
        %v574 = vpop.f32.mrf.mxu0
        %v575 = vadd.f32 %v543, %v574
        %576 = vmatmul.f32.gmra.mxu0 %v466
        %v577 = vpop.f32.mrf.mxu0
        %v578 = vadd.f32 %v543, %v577
        %579 = vmatmul.f32.gmra.mxu0 %v467
        %v580 = vpop.f32.mrf.mxu0
        %v581 = vadd.f32 %v543, %v580
        %582 = vmatmul.f32.gmra.mxu0 %v468
        %v583 = vpop.f32.mrf.mxu0
        %v584 = vadd.f32 %v543, %v583
        %585 = vmatmul.f32.gmra.mxu0 %v469
        %v586 = vpop.f32.mrf.mxu0
        %v587 = vadd.f32 %v543, %v586
        %588 = vmatmul.f32.gmra.mxu0 %v470
        %v589 = vpop.f32.mrf.mxu0
        %v590 = vadd.f32 %v543, %v589
        %591 = vmatmul.f32.gmra.mxu0 %v471
        %v592 = vpop.f32.mrf.mxu0
        %v593 = vadd.f32 %v543, %v592
        %594 = vmatmul.f32.gmra.mxu0 %v472
        %v595 = vpop.f32.mrf.mxu0
        %v596 = vadd.f32 %v543, %v595
        %597 = vmatmul.f32.gmra.mxu0 %v473
        %v598 = vpop.f32.mrf.mxu0
        %v599 = vadd.f32 %v543, %v598
        %600 = vmatmul.f32.gmra.mxu0 %v474
        %v601 = vpop.f32.mrf.mxu0
        %v602 = vadd.f32 %v543, %v601
        %603 = vmatmul.f32.gmra.mxu0 %v475
        %v604 = vpop.f32.mrf.mxu0
        %v605 = vadd.f32 %v543, %v604
        %606 = vmatmul.f32.gmra.mxu0 %v476
        %v607 = vpop.f32.mrf.mxu0
        %v608 = vadd.f32 %v543, %v607
        %609 = vmatmul.f32.gmra.mxu0 %v477
        %v610 = vpop.f32.mrf.mxu0
        %v611 = vadd.f32 %v543, %v610
        %612 = vmatmul.f32.gmra.mxu0 %v478
        %v613 = vpop.f32.mrf.mxu0
        %v614 = vadd.f32 %v543, %v613
        %615 = vmatmul.f32.gmra.mxu0 %v479
        %v616 = vpop.f32.mrf.mxu0
        %v617 = vadd.f32 %v543, %v616
        %618 = vmatmul.f32.gmra.mxu0 %v480
        %v619 = vpop.f32.mrf.mxu0
        %v620 = vadd.f32 %v543, %v619
        %621 = vmatmul.f32.gmra.mxu0 %v481
        %v622 = vpop.f32.mrf.mxu0
        %v623 = vadd.f32 %v543, %v622
        %624 = vmatmul.f32.gmra.mxu0 %v482
        %v625 = vpop.f32.mrf.mxu0
        %v626 = vadd.f32 %v543, %v625
        %627 = vmatmul.f32.gmra.mxu0 %v483
        %v628 = vpop.f32.mrf.mxu0
        %v629 = vadd.f32 %v543, %v628
        %630 = vmatmul.f32.gmra.mxu0 %v484
        %v631 = vpop.f32.mrf.mxu0
        %v632 = vadd.f32 %v543, %v631
        %633 = vmatmul.f32.gmra.mxu0 %v485
        %v634 = vpop.f32.mrf.mxu0
        %v635 = vadd.f32 %v543, %v634
        %636 = vmatmul.f32.gmra.mxu0 %v486
        %v637 = vpop.f32.mrf.mxu0
        %v638 = vadd.f32 %v543, %v637
        %639 = vmatmul.f32.gmra.mxu0 %v487
        %v640 = vpop.f32.mrf.mxu0
        %v641 = vadd.f32 %v543, %v640
        %642 = vmatmul.f32.gmra.mxu0 %v488
        %v643 = vpop.f32.mrf.mxu0
        %v644 = vadd.f32 %v543, %v643
        %645 = vmatmul.f32.gmra.mxu0 %v489
        %v646 = vpop.f32.mrf.mxu0
        %v647 = vadd.f32 %v543, %v646
        %648 = vmatmul.f32.gmra.mxu0 %v490
        %v649 = vpop.f32.mrf.mxu0
        %v650 = vadd.f32 %v543, %v649
        %651 = vmatmul.f32.gmra.mxu0 %v491
        %v652 = vpop.f32.mrf.mxu0
        %v653 = vadd.f32 %v543, %v652
        %654 = vmatmul.f32.gmra.mxu0 %v492
        %v655 = vpop.f32.mrf.mxu0
        %v656 = vadd.f32 %v543, %v655
        %657 = vmatmul.f32.gmra.mxu0 %v493
        %v658 = vpop.f32.mrf.mxu0
        %v659 = vadd.f32 %v543, %v658
        %660 = vmatmul.f32.gmra.mxu0 %v494
        %v661 = vpop.f32.mrf.mxu0
        %v662 = vadd.f32 %v543, %v661
        %663 = vmatmul.f32.gmra.mxu0 %v495
        %v664 = vpop.f32.mrf.mxu0
        %v665 = vadd.f32 %v543, %v664
        %666 = vmatmul.f32.gmra.mxu0 %v496
        %v667 = vpop.f32.mrf.mxu0
        %v668 = vadd.f32 %v543, %v667
        %669 = vmatmul.f32.gmra.mxu0 %v497
        %v670 = vpop.f32.mrf.mxu0
        %v671 = vadd.f32 %v543, %v670
        %672 = vmatmul.f32.gmra.mxu0 %v498
        %v673 = vpop.f32.mrf.mxu0
        %v674 = vadd.f32 %v543, %v673
        %675 = vmatmul.f32.gmra.mxu0 %v499
        %v676 = vpop.f32.mrf.mxu0
        %v677 = vadd.f32 %v543, %v676
        %678 = vmatmul.f32.gmra.mxu0 %v500
        %v679 = vpop.f32.mrf.mxu0
        %v680 = vadd.f32 %v543, %v679
        %681 = vmatmul.f32.gmra.mxu0 %v501
        %v682 = vpop.f32.mrf.mxu0
        %v683 = vadd.f32 %v543, %v682
        %684 = vmatmul.f32.gmra.mxu0 %v502
        %v685 = vpop.f32.mrf.mxu0
        %v686 = vadd.f32 %v543, %v685
        %687 = vmatmul.f32.gmra.mxu0 %v503
        %v688 = vpop.f32.mrf.mxu0
        %v689 = vadd.f32 %v543, %v688
        %690 = vmatmul.f32.gmra.mxu0 %v504
        %v691 = vpop.f32.mrf.mxu0
        %v692 = vadd.f32 %v543, %v691
        %693 = vmatmul.f32.gmra.mxu0 %v505
        %v694 = vpop.f32.mrf.mxu0
        %v695 = vadd.f32 %v543, %v694
        %696 = vmatmul.f32.gmra.mxu0 %v506
        %v697 = vpop.f32.mrf.mxu0
        %v698 = vadd.f32 %v543, %v697
        %699 = vmatmul.f32.gmra.mxu0 %v507
        %v700 = vpop.f32.mrf.mxu0
        %v701 = vadd.f32 %v543, %v700
        %702 = vmatmul.f32.gmra.mxu0 %v508
        %v703 = vpop.f32.mrf.mxu0
        %v704 = vadd.f32 %v543, %v703
        %705 = vmatmul.f32.gmra.mxu0 %v509
        %v706 = vpop.f32.mrf.mxu0
        %v707 = vadd.f32 %v543, %v706
        %708 = vmatmul.f32.gmra.mxu0 %v510
        %v709 = vpop.f32.mrf.mxu0
        %v710 = vadd.f32 %v543, %v709
        %711 = vmatmul.f32.gmra.mxu0 %v511
        %v712 = vpop.f32.mrf.mxu0
        %v713 = vadd.f32 %v543, %v712
        %714 = vmatmul.f32.gmra.mxu0 %v512
        %v715 = vpop.f32.mrf.mxu0
        %v716 = vadd.f32 %v543, %v715
        %717 = vmatmul.f32.gmra.mxu0 %v513
        %v718 = vpop.f32.mrf.mxu0
        %v719 = vadd.f32 %v543, %v718
        %720 = vmatmul.f32.gmra.mxu0 %v514
        %v721 = vpop.f32.mrf.mxu0
        %v722 = vadd.f32 %v543, %v721
        %723 = vmatmul.f32.gmra.mxu0 %v515
        %v724 = vpop.f32.mrf.mxu0
        %v725 = vadd.f32 %v543, %v724
        %726 = vmatmul.f32.gmra.mxu0 %v516
        %v727 = vpop.f32.mrf.mxu0
        %v728 = vadd.f32 %v543, %v727
        %729 = vmatmul.f32.gmra.mxu0 %v517
        %v730 = vpop.f32.mrf.mxu0
        %v731 = vadd.f32 %v543, %v730
        %732 = vmatmul.f32.gmra.mxu0 %v518
        %v733 = vpop.f32.mrf.mxu0
        %v734 = vadd.f32 %v543, %v733
        %735 = vmatmul.f32.gmra.mxu0 %v519
        %v736 = vpop.f32.mrf.mxu0
        %v737 = vadd.f32 %v543, %v736
        %738 = vmatmul.f32.gmra.mxu0 %v520
        %v739 = vpop.f32.mrf.mxu0
        %v740 = vadd.f32 %v543, %v739
        %741 = vmatmul.f32.gmra.mxu0 %v521
        %v742 = vpop.f32.mrf.mxu0
        %v743 = vadd.f32 %v543, %v742
        %744 = vmatmul.f32.gmra.mxu0 %v522
        %v745 = vpop.f32.mrf.mxu0
        %v746 = vadd.f32 %v543, %v745
        %747 = vmatmul.f32.gmra.mxu0 %v523
        %v748 = vpop.f32.mrf.mxu0
        %v749 = vadd.f32 %v543, %v748
        %750 = vmatmul.f32.gmra.mxu0 %v524
        %v751 = vpop.f32.mrf.mxu0
        %v752 = vadd.f32 %v543, %v751
        %753 = vdwg.mxu0
        %v754 = vmax.f32 %v563, 0.0
        %v755 = vmax.f32 %v566, 0.0
        %v756 = vmax.f32 %v569, 0.0
        %v757 = vmax.f32 %v572, 0.0
        %v758 = vmax.f32 %v575, 0.0
        %v759 = vmax.f32 %v578, 0.0
        %v760 = vmax.f32 %v581, 0.0
        %v761 = vmax.f32 %v584, 0.0
        %v762 = vmax.f32 %v587, 0.0
        %v763 = vmax.f32 %v590, 0.0
        %v764 = vmax.f32 %v593, 0.0
        %v765 = vmax.f32 %v596, 0.0
        %v766 = vmax.f32 %v599, 0.0
        %v767 = vmax.f32 %v602, 0.0
        %v768 = vmax.f32 %v605, 0.0
        %v769 = vmax.f32 %v608, 0.0
        %v770 = vmax.f32 %v611, 0.0
        %v771 = vmax.f32 %v614, 0.0
        %v772 = vmax.f32 %v617, 0.0
        %v773 = vmax.f32 %v620, 0.0
        %v774 = vmax.f32 %v623, 0.0
        %v775 = vmax.f32 %v626, 0.0
        %v776 = vmax.f32 %v629, 0.0
        %v777 = vmax.f32 %v632, 0.0
        %v778 = vmax.f32 %v635, 0.0
        %v779 = vmax.f32 %v638, 0.0
        %v780 = vmax.f32 %v641, 0.0
        %v781 = vmax.f32 %v644, 0.0
        %v782 = vmax.f32 %v647, 0.0
        %v783 = vmax.f32 %v650, 0.0
        %v784 = vmax.f32 %v653, 0.0
        %v785 = vmax.f32 %v656, 0.0
        %v786 = vmax.f32 %v659, 0.0
        %v787 = vmax.f32 %v662, 0.0
        %v788 = vmax.f32 %v665, 0.0
        %v789 = vmax.f32 %v668, 0.0
        %v790 = vmax.f32 %v671, 0.0
        %v791 = vmax.f32 %v674, 0.0
        %v792 = vmax.f32 %v677, 0.0
        %v793 = vmax.f32 %v680, 0.0
        %v794 = vmax.f32 %v683, 0.0
        %v795 = vmax.f32 %v686, 0.0
        %v796 = vmax.f32 %v689, 0.0
        %v797 = vmax.f32 %v692, 0.0
        %v798 = vmax.f32 %v695, 0.0
        %v799 = vmax.f32 %v698, 0.0
        %v800 = vmax.f32 %v701, 0.0
        %v801 = vmax.f32 %v704, 0.0
        %v802 = vmax.f32 %v707, 0.0
        %v803 = vmax.f32 %v710, 0.0
        %v804 = vmax.f32 %v713, 0.0
        %v805 = vmax.f32 %v716, 0.0
        %v806 = vmax.f32 %v719, 0.0
        %v807 = vmax.f32 %v722, 0.0
        %v808 = vmax.f32 %v725, 0.0
        %v809 = vmax.f32 %v728, 0.0
        %v810 = vmax.f32 %v731, 0.0
        %v811 = vmax.f32 %v734, 0.0
        %v812 = vmax.f32 %v737, 0.0
        %v813 = vmax.f32 %v740, 0.0
        %v814 = vmax.f32 %v743, 0.0
        %v815 = vmax.f32 %v746, 0.0
        %v816 = vmax.f32 %v749, 0.0
        %v817 = vmax.f32 %v752, 0.0
        %v818 = vld [vmem:[%s4] sm:$0x1]
        %s819 = sld [smem:[#allocation2]]
        %v820 = vstv %s819
        %821 = vmatpush.xpose.msra.mxu0 %v769
        %822 = vmatpush.xpose.msra.mxu0 %v768
        %823 = vmatpush.xpose.msra.mxu0 %v767
        %824 = vmatpush.xpose.msra.mxu0 %v766
        %825 = vmatpush.xpose.msra.mxu0 %v765
        %826 = vmatpush.xpose.msra.mxu0 %v764
        %827 = vmatpush.xpose.msra.mxu0 %v763
        %828 = vmatpush.xpose.msra.mxu0 %v762
        %829 = vmatpush.xpose.msra.mxu0 %v761
        %830 = vmatpush.xpose.msra.mxu0 %v760
        %831 = vmatpush.xpose.msra.mxu0 %v759
        %832 = vmatpush.xpose.msra.mxu0 %v758
        %833 = vmatpush.xpose.msra.mxu0 %v757
        %834 = vmatpush.xpose.msra.mxu0 %v756
        %835 = vmatpush.xpose.msra.mxu0 %v755
        %836 = vmatpush.xpose.msra.mxu0 %v754
        %837 = vmatmul.f32.gmra.mxu0 %v818
        %v838 = vpop.f32.mrf.mxu0
        %v839 = vadd.f32 %v820, %v838
        %840 = vdwg.mxu0
        %841 = vmatpush.xpose.msra.mxu0 %v785
        %842 = vmatpush.xpose.msra.mxu0 %v784
        %843 = vmatpush.xpose.msra.mxu0 %v783
        %844 = vmatpush.xpose.msra.mxu0 %v782
        %845 = vmatpush.xpose.msra.mxu0 %v781
        %846 = vmatpush.xpose.msra.mxu0 %v780
        %847 = vmatpush.xpose.msra.mxu0 %v779
        %848 = vmatpush.xpose.msra.mxu0 %v778
        %849 = vmatpush.xpose.msra.mxu0 %v777
        %850 = vmatpush.xpose.msra.mxu0 %v776
        %851 = vmatpush.xpose.msra.mxu0 %v775
        %852 = vmatpush.xpose.msra.mxu0 %v774
        %853 = vmatpush.xpose.msra.mxu0 %v773
        %854 = vmatpush.xpose.msra.mxu0 %v772
        %855 = vmatpush.xpose.msra.mxu0 %v771
        %856 = vmatpush.xpose.msra.mxu0 %v770
        %857 = vmatmul.f32.gmra.mxu0 %v818
        %v858 = vpop.f32.mrf.mxu0
        %v859 = vadd.f32 %v820, %v858
        %860 = vdwg.mxu0
        %861 = vmatpush.xpose.msra.mxu0 %v801
        %862 = vmatpush.xpose.msra.mxu0 %v800
        %863 = vmatpush.xpose.msra.mxu0 %v799
        %864 = vmatpush.xpose.msra.mxu0 %v798
        %865 = vmatpush.xpose.msra.mxu0 %v797
        %866 = vmatpush.xpose.msra.mxu0 %v796
        %867 = vmatpush.xpose.msra.mxu0 %v795
        %868 = vmatpush.xpose.msra.mxu0 %v794
        %869 = vmatpush.xpose.msra.mxu0 %v793
        %870 = vmatpush.xpose.msra.mxu0 %v792
        %871 = vmatpush.xpose.msra.mxu0 %v791
        %872 = vmatpush.xpose.msra.mxu0 %v790
        %873 = vmatpush.xpose.msra.mxu0 %v789
        %874 = vmatpush.xpose.msra.mxu0 %v788
        %875 = vmatpush.xpose.msra.mxu0 %v787
        %876 = vmatpush.xpose.msra.mxu0 %v786
        %877 = vmatmul.f32.gmra.mxu0 %v818
        %v878 = vpop.f32.mrf.mxu0
        %v879 = vadd.f32 %v820, %v878
        %880 = vdwg.mxu0
        %881 = vmatpush.xpose.msra.mxu0 %v817
        %882 = vmatpush.xpose.msra.mxu0 %v816
        %883 = vmatpush.xpose.msra.mxu0 %v815
        %884 = vmatpush.xpose.msra.mxu0 %v814
        %885 = vmatpush.xpose.msra.mxu0 %v813
        %886 = vmatpush.xpose.msra.mxu0 %v812
        %887 = vmatpush.xpose.msra.mxu0 %v811
        %888 = vmatpush.xpose.msra.mxu0 %v810
        %889 = vmatpush.xpose.msra.mxu0 %v809
        %890 = vmatpush.xpose.msra.mxu0 %v808
        %891 = vmatpush.xpose.msra.mxu0 %v807
        %892 = vmatpush.xpose.msra.mxu0 %v806
        %893 = vmatpush.xpose.msra.mxu0 %v805
        %894 = vmatpush.xpose.msra.mxu0 %v804
        %895 = vmatpush.xpose.msra.mxu0 %v803
        %896 = vmatpush.xpose.msra.mxu0 %v802
        %897 = vmatmul.f32.gmra.mxu0 %v818
        %v898 = vpop.f32.mrf.mxu0
        %v899 = vadd.f32 %v820, %v898
        %900 = vdwg.mxu0
        %v905 = vrot.slane %v859, 7
        %v906 = vrot.slane %v879, 6
        %v907 = vrot.slane %v899, 5
        %vm908 = vcmask 1040384
        %v909 = vsel %vm908, %v839, %v905
        %vm910 = vcmask 1042434
        %v911 = vsel %vm910, %v906, %v907
        %vm912 = vcmask 1041408
        %v913 = vsel %vm912, %v909, %v911
        %v915 = vlaneseq
        %vm916 = vcmp.ge.s32.totalorder %v915, 0
        %vm917 = vcmp.lt.s32.totalorder %v915, 512
        %vm918 = vmand %vm916, %vm917
        %919 = vst.msk [vmem:[%s330] sm:$0xf] %vm918, %v913
        %s920 = sand.u32 %s171, 1
        %s921 = scalar_lea.sflag [#allocation5], %s920
        %s922 = sand.u32 %s171, 1
        %s923 = smul.addr %s922, 4
        %s924 = scalar_lea.vmem [#allocation9], %s923
        // Predicated region
        $region57: #{tpu_custom_call.1} parent=43 // pred_check
          %p925 = pneg %p181
        $region58: #{tpu_custom_call.1} parent=43 // pred_check_branch
          %927 = sbr.rel (%p925) target = $region60
        $region59: #{tpu_custom_call.1} parent=43 // pred_region
          %929 = vsyncadd %s921, 0
          %s930 = smul.addr %s27, 4
          %s931 = scalar_lea.hbm %s6, %s930
          %s933 = sshll.u32 %s924, 4
          %s934 = int_to_ptr.vmem [resolvable:$true] %s933
          %s935 = sshll.u32 %s931, 4
          %s936 = int_to_ptr.hbm [resolvable:$true] %s935
          %938 = dma.vmem_to_hbm [thread:$0]  %s934, 64, %s936, %s921
        $region60: #{tpu_custom_call.1} parent=43 // pred_fallthru
          _
      $region44: #{tpu_custom_call.1} parent=5 // pred_fallthru
        _
      %p939 = scmp.le.s32.totalorder 2, %s22
      // Predicated region
      $region61: #{tpu_custom_call.1} parent=5 // pred_check
        %p940 = pneg %p939
      $region62: #{tpu_custom_call.1} parent=5 // pred_check_branch
        %942 = sbr.rel (%p940) target = $region64
      $region63: #{tpu_custom_call.1} parent=5 // pred_region
        %s943 = ssub.s32 %s22, 2
        // Predicated region
        $region65: #{tpu_custom_call.1} parent=63 // pred_check
          %p944 = pneg %p187
        $region66: #{tpu_custom_call.1} parent=63 // pred_check_branch
          %946 = sbr.rel (%p944) target = $region68
        $region67: #{tpu_custom_call.1} parent=63 // pred_region
          %s947 = sand.u32 %s172, 1
          %s948 = scalar_lea.sflag [#allocation5], %s947
          %s949 = sand.u32 %s172, 1
          %s950 = smul.addr %s949, 4
          %s951 = scalar_lea.vmem [#allocation9], %s950
          %953 = dma.done %s948, 64
        $region68: #{tpu_custom_call.1} parent=63 // pred_fallthru
          _
      $region64: #{tpu_custom_call.1} parent=5 // pred_fallthru
        _
    $region6: #{tpu_custom_call.1} parent=1 // loop_footer
      %s26 = sadd.s32 1, %s22
    $region7: #{tpu_custom_call.1} parent=1 // loop_footer_branch
      %21 = sbr.rel target = $region3
    $region8: #{tpu_custom_call.1} parent=1 // loop_exit
      _
    %954 = vsyncpa [#allocation4], 1
    %s955 = scalar_lea.sflag [#allocation4], 1
    %956 = vsyncpa %s955, 1
    %957 = vsyncpa [#allocation7], 1
    %s958 = scalar_lea.sflag [#allocation7], 1
    %959 = vsyncpa %s958, 1
    %960 = vsyncpa [#allocation5], 1
    %s961 = scalar_lea.sflag [#allocation5], 1
    %962 = vsyncpa %s961, 1

</llo_original>
